<compile_context>
chip_gen: v7x
topology: tpu7x:2x2x1
jax: 0.10.0
libtpu: 0.0.40
codegen_flags: <defaults>
</compile_context>

<pallas_src>
import functools

import jax
import jax.numpy as jnp
from jax import lax
from jax.experimental import pallas as pl
from jax.experimental.pallas import tpu as pltpu

_LANES = 128
_MAX_CHUNKS = 32  # caps per-step unrolled code size: 32 * 128 = 4096 lanes/step


def _gap_kernel(x_ref, o_ref, acc_ref, *, inv_hw, hw, bhw, n_chunks, grid_k):
    """One (bn, bc, bhw) tile: per-lane partial sums into a (bn, bc, 128) f32 acc."""
    k = pl.program_id(2)

    @pl.when(k == 0)
    def _init():
        acc_ref[...] = jnp.zeros_like(acc_ref)

    def add_chunks(base_off):
        # base_off: static global HW offset of chunk 0 for this step, or None
        # when every chunk is known to be fully in range (non-tail steps).
        part = None
        for i in range(n_chunks):
            if base_off is not None:
                start = base_off + i * _LANES
                if start >= hw:
                    break  # chunk entirely out of range: skip statically
                valid = min(_LANES, hw - start)
            else:
                valid = _LANES
            c = x_ref[:, :, i * _LANES:(i + 1) * _LANES].astype(jnp.float32)
            if valid < _LANES:
                lane = lax.broadcasted_iota(jnp.int32, c.shape, 2)
                c = jnp.where(lane < valid, c, 0.0)
            part = c if part is None else part + c
        if part is not None:
            acc_ref[...] += part  # pure VPU vreg adds; no cross-lane work here

    has_tail = (grid_k * bhw != hw)
    if not has_tail:
        add_chunks(None)
    elif grid_k == 1:
        add_chunks(0)
    else:
        @pl.when(k < grid_k - 1)
        def _bulk():
            add_chunks(None)

        @pl.when(k == grid_k - 1)
        def _tail():
            add_chunks((grid_k - 1) * bhw)

    @pl.when(k == grid_k - 1)
    def _finalize():
        # Single cross-lane (XLU) reduce per output block, then scale + cast.
        sums = jnp.sum(acc_ref[...], axis=-1)
        o_ref[...] = (sums * inv_hw).astype(o_ref.dtype)


def _pick_block(dim, mult, max_size):
    """Divisor of `dim` that is a multiple of `mult` and <= max_size, else full extent."""
    dim = int(dim)
    if dim <= max_size:
        return dim
    cand = (max_size // mult) * mult
    while cand >= mult:
        if dim % cand == 0:
            return cand
        cand -= mult
    return dim


def global_average_pooling(x, *, block_budget_bytes=None):
    """Equivalent of GlobalAveragePooling.forward: mean over all spatial dims.

    Accepts (N, C, *spatial) in any float dtype, returns (N, C) in the same
    dtype (accumulation in f32 inside the kernel).
    """
    N, C = int(x.shape[0]), int(x.shape[1])
    hw = 1
    for d in x.shape[2:]:
        hw *= int(d)
    x3 = x.reshape(N, C, hw)  # free reshape on contiguous NC* layout; no pre-cast
    itemsize = x.dtype.itemsize

    # Hardware-aware budgets: v7x = 64 MiB VMEM/TC, v5e/v6e = 128 MiB.
    try:
        vmem_cap = int(getattr(pltpu.get_tpu_info(), "vmem_capacity_bytes",
                               64 * 1024 * 1024))
    except Exception:
        vmem_cap = 64 * 1024 * 1024
    if block_budget_bytes is None:
        block_budget_bytes = (12 << 20) if vmem_cap >= (96 << 20) else (8 << 20)

    # Block sizes:
    #   bn : leading dim of input block; sublane dim of the (N, C) output block.
    #   bc : sublane dim of input block AND lane dim of output block; capped at
    #        128 so the contiguous innermost (bhw) axis gets the byte budget.
    #        (With bc=128, any C >= 256 also keeps >= 2 parallel grid steps for
    #        the two v7x TensorCores.)
    #   bhw: multiple of 128; sized from the per-block byte budget, capped so the
    #        per-step unrolled chunk loop stays small. Ragged HW -> masked tail.
    bn = _pick_block(N, 8, 8)
    bc = _pick_block(C, 128, 128)
    chunk_bytes = bn * bc * _LANES * itemsize
    hw_chunks = -(-hw // _LANES)
    n_chunks = max(1, min(block_budget_bytes // max(1, chunk_bytes),
                          _MAX_CHUNKS, hw_chunks))
    bhw = n_chunks * _LANES
    grid_k = -(-hw // bhw)
    grid = ((N + bn - 1) // bn, (C + bc - 1) // bc, grid_k)

    # Scoped VMEM: double-buffered input + output block + lane-width accumulator
    # + headroom, clamped safely below physical VMEM (48 MiB cap on v7x).
    block_bytes = bn * bc * bhw * itemsize
    acc_bytes = bn * bc * _LANES * 4
    out_bytes = bn * bc * itemsize
    needed = 2 * block_bytes + 2 * out_bytes + acc_bytes + (6 << 20)
    vmem_limit = int(min(max(vmem_cap - (16 << 20), 24 << 20),
                         max(16 << 20, needed)))

    kernel = functools.partial(
        _gap_kernel, inv_hw=1.0 / float(hw), hw=hw, bhw=bhw,
        n_chunks=n_chunks, grid_k=grid_k)

    out = pl.pallas_call(
        kernel,
        out_shape=jax.ShapeDtypeStruct((N, C), x.dtype),
        grid_spec=pltpu.PrefetchScalarGridSpec(
            num_scalar_prefetch=0,
            grid=grid,
            in_specs=[pl.BlockSpec((bn, bc, bhw), lambda i, j, k: (i, j, k))],
            out_specs=pl.BlockSpec((bn, bc), lambda i, j, k: (i, j)),
            scratch_shapes=[pltpu.VMEM((bn, bc, _LANES), jnp.float32)],
        ),
        compiler_params=pltpu.CompilerParams(
            dimension_semantics=("parallel", "parallel", "arbitrary"),
            vmem_limit_bytes=vmem_limit,
        ),
        cost_estimate=pl.CostEstimate(
            flops=N * C * hw,
            transcendentals=0,
            bytes_accessed=N * C * hw * itemsize + N * C * itemsize,
        ),
    )(x3)
    # matches `outs.view(inputs.size(0), -1)`
    return out


if __name__ == "__main__":
    key = jax.random.PRNGKey(0)

    # Small NCHW input consistent with the module's forward (dim=2 case).
    N, C, H, W = 2, 4, 16, 16
    x = jax.random.normal(key, (N, C, H, W), dtype=jnp.float32)
    y = jax.block_until_ready(global_average_pooling(x))
    y_ref = jnp.mean(x, axis=(2, 3))
    assert y.shape == (N, C), y.shape
    assert jnp.allclose(y, y_ref, atol=1e-5, rtol=1e-5)

    # Typical CNN head: 7x7 spatial (HW=49 -> single masked 128-lane chunk).
    x_cnn = jax.random.normal(jax.random.PRNGKey(1), (2, 128, 7, 7),
                              dtype=jnp.float32)
    y_cnn = jax.block_until_ready(global_average_pooling(x_cnn))
    y_cnn_ref = jnp.mean(x_cnn, axis=(2, 3))
    assert jnp.allclose(y_cnn, y_cnn_ref, atol=1e-5, rtol=1e-5)

    # Larger bf16 case exercising the tiled path (parallel grid > 1, masked tail).
    x2 = jax.random.normal(jax.random.PRNGKey(2), (16, 256, 28, 28),
                           dtype=jnp.bfloat16)
    y2 = jax.block_until_ready(global_average_pooling(x2))
    y2_ref = jnp.mean(x2.astype(jnp.float32), axis=(2, 3)).astype(jnp.bfloat16)
    assert y2.shape == (16, 256), y2.shape
    assert jnp.allclose(y2.astype(jnp.float32), y2_ref.astype(jnp.float32),
                        atol=2e-2, rtol=2e-2)

    # Ragged HW with a multi-step reduction axis (grid_k > 1 + masked tail step).
    x3 = jax.random.normal(jax.random.PRNGKey(3), (1, 128, 65, 67),
                           dtype=jnp.float32)
    y3 = jax.block_until_ready(global_average_pooling(x3))
    y3_ref = jnp.mean(x3, axis=(2, 3))
    assert jnp.allclose(y3, y3_ref, atol=1e-5, rtol=1e-5)

    print("KERNEL_OK")
</pallas_src>

<mosaic_0001>
module attributes {stable_mosaic.version = 11 : i64} {
  func.func @_gap_kernel(%arg0: i32, %arg1: i32, %arg2: i32, %arg3: memref<2x4x256xf32, #tpu.memory_space<vmem>>, %arg4: memref<2x4xf32, #tpu.memory_space<vmem>>, %arg5: memref<2x4x128xf32, #tpu.memory_space<vmem>>) attributes {dimension_semantics = [#tpu.dimension_semantics<parallel>, #tpu.dimension_semantics<parallel>, #tpu.dimension_semantics<arbitrary>], iteration_bounds = array<i64: 1, 1, 1>, scalar_prefetch = 0 : i64, scratch_operands = 1 : i64, tpu.core_type = #tpu.core_type<tc>, window_params = [{transform_indices = @transform_0, window_bounds = array<i64: 2, 4, 256>}, {transform_indices = @transform_1, window_bounds = array<i64: 2, 4>}]} {
    %c0_i32 = arith.constant 0 : i32
    %0 = arith.cmpi eq, %arg2, %c0_i32 : i32
    %1 = arith.extui %0 : i1 to i32
    %c0_i32_0 = arith.constant 0 : i32
    %2 = arith.cmpi ne, %1, %c0_i32_0 : i32
    scf.if %2 {
      %cst = arith.constant 0.000000e+00 : f32
      %12 = vector.broadcast %cst : f32 to vector<2x4x128xf32>
      %c0_13 = arith.constant 0 : index
      %c0_14 = arith.constant 0 : index
      %c0_15 = arith.constant 0 : index
      %13 = vector.load %arg5[%c0_13, %c0_14, %c0_15] : memref<2x4x128xf32, #tpu.memory_space<vmem>>, vector<2x4x128xf32>
      tpu.vector_store %arg5[%c0_13, %c0_14, %c0_15], %12 {strides = array<i32>} : memref<2x4x128xf32, #tpu.memory_space<vmem>>, vector<2x4x128xf32>,
    } else {
    }
    %c0 = arith.constant 0 : index
    %c0_1 = arith.constant 0 : index
    %c0_2 = arith.constant 0 : index
    %3 = vector.load %arg3[%c0, %c0_1, %c0_2] : memref<2x4x256xf32, #tpu.memory_space<vmem>>, vector<2x4x128xf32>
    %c0_3 = arith.constant 0 : index
    %c0_4 = arith.constant 0 : index
    %c128 = arith.constant 128 : index
    %4 = vector.load %arg3[%c0_3, %c0_4, %c128] : memref<2x4x256xf32, #tpu.memory_space<vmem>>, vector<2x4x128xf32>
    %5 = arith.addf %3, %4 : vector<2x4x128xf32>
    %c0_5 = arith.constant 0 : index
    %c0_6 = arith.constant 0 : index
    %c0_7 = arith.constant 0 : index
    %6 = vector.load %arg5[%c0_5, %c0_6, %c0_7] : memref<2x4x128xf32, #tpu.memory_space<vmem>>, vector<2x4x128xf32>
    %7 = arith.addf %6, %5 : vector<2x4x128xf32>
    %c0_8 = arith.constant 0 : index
    %c0_9 = arith.constant 0 : index
    %c0_10 = arith.constant 0 : index
    %8 = vector.load %arg5[%c0_8, %c0_9, %c0_10] : memref<2x4x128xf32, #tpu.memory_space<vmem>>, vector<2x4x128xf32>
    tpu.vector_store %arg5[%c0_8, %c0_9, %c0_10], %7 {strides = array<i32>} : memref<2x4x128xf32, #tpu.memory_space<vmem>>, vector<2x4x128xf32>,
    %c0_i32_11 = arith.constant 0 : i32
    %9 = arith.cmpi eq, %arg2, %c0_i32_11 : i32
    %10 = arith.extui %9 : i1 to i32
    %c0_i32_12 = arith.constant 0 : i32
    %11 = arith.cmpi ne, %10, %c0_i32_12 : i32
    scf.if %11 {
      %c0_13 = arith.constant 0 : index
      %c0_14 = arith.constant 0 : index
      %c0_15 = arith.constant 0 : index
      %12 = vector.load %arg5[%c0_13, %c0_14, %c0_15] : memref<2x4x128xf32, #tpu.memory_space<vmem>>, vector<2x4x128xf32>
      %cst = arith.constant dense<0.000000e+00> : vector<2x4xf32>
      %13 = vector.multi_reduction <add>, %12, %cst [2] : vector<2x4x128xf32> to vector<2x4xf32>
      %cst_16 = arith.constant 3.906250e-03 : f32
      %14 = vector.broadcast %cst_16 : f32 to vector<2x4xf32>
      %15 = arith.mulf %13, %14 : vector<2x4xf32>
      %c0_17 = arith.constant 0 : index
      %c0_18 = arith.constant 0 : index
      %16 = vector.load %arg4[%c0_17, %c0_18] : memref<2x4xf32, #tpu.memory_space<vmem>>, vector<2x4xf32>
      tpu.vector_store %arg4[%c0_17, %c0_18], %15 {strides = array<i32>} : memref<2x4xf32, #tpu.memory_space<vmem>>, vector<2x4xf32>,
    } else {
    }
    return
  }
  func.func @transform_0(%arg0: i32, %arg1: i32, %arg2: i32) -> (i32, i32, i32) {
    %c0_i32 = arith.constant 0 : i32
    return %arg0, %arg1, %arg2 : i32, i32, i32
  }
  func.func @transform_1(%arg0: i32, %arg1: i32, %arg2: i32) -> (i32, i32) {
    %c0_i32 = arith.constant 0 : i32
    return %arg0, %arg1 : i32, i32
  }
}

</mosaic_0001>

<llo_original>
// kernel: tpu_custom_call.1
$region0: #{tpu_custom_call.1}
  #allocation0 [shape = 'u32[]', space=smem, size = 0x4, offset = 0x4, fixed_abs, tag = 'smem constant byte address 0x4 - core index']
  #allocation1 [shape = 'u32[144,128]{1,0:T(1,128)}', space=vmem, size = 0x12000, scoped, tag = 'internal scratch']
  #allocation2 [shape = 'f32[2,4,128]{2,1,0:T(4,128)}', space=vmem, size = 0x1000, scoped, tag = 'scratch operand']
  %s0 = inlined_call_operand.hbm [shape: f32[2,4,256], index: 0, kind: input, shape index: {}]
  %s1 = inlined_call_operand.hbm [shape: f32[2,4], index: 1, kind: output, shape index: {}]
  %s2 = sld [smem:[#allocation0]]
  $region26: #{tpu_custom_call.1} parent=0
    _
  %s4 = ssub.s32 1, %s2
  %s5 = scalar_select 0, %s4, %s2
  $region1: #{tpu_custom_call.1} parent=0
    #allocation3 [shape = 'u8[8192]{0}', space=vmem, size = 0x2000, scoped, tag = 'input window, operand 0, single buffered']
    #allocation4 [shape = 's32[1]{0}', space=sflag, size = 0x4, scoped, tag = 'scoped memory for tpu_custom_call.1']
    #allocation5 [shape = 's32[1]{0}', space=sflag, size = 0x4, scoped, tag = 'scoped memory for tpu_custom_call.1']
    #allocation6 [shape = 'u8[1024]{0}', space=vmem, size = 0x400, scoped, tag = 'output window, operand 0, single buffered']
    %6 = vsyncpa [#allocation4], 0
    %7 = vsyncpa [#allocation5], 0
    // Predicated region
    $region2: #{tpu_custom_call.1} parent=1 // pred_check
      _
    $region3: #{tpu_custom_call.1} parent=1 // pred_check_branch
      %9 = sbr.rel (0) target = $region5
    $region4: #{tpu_custom_call.1} parent=1 // pred_region
      %s11 = ssub.s32 256, 256
      %12 = vsyncadd [#allocation4], %s11
      %s13 = sshll.u32 [#allocation3], 4
      %s14 = int_to_ptr.vmem [resolvable:$true] %s13
      %19 = dma.hbm_to_vmem [thread:$0]  %s0, 256, %s14, [#allocation4], 128, 128, 8
    $region5: #{tpu_custom_call.1} parent=1 // pred_fallthru
      _
    // Predicated region
    $region6: #{tpu_custom_call.1} parent=1 // pred_check
      _
    $region7: #{tpu_custom_call.1} parent=1 // pred_check_branch
      %21 = sbr.rel (0) target = $region9
    $region8: #{tpu_custom_call.1} parent=1 // pred_region
      %22 = dma.done [#allocation4], 256
    $region9: #{tpu_custom_call.1} parent=1 // pred_fallthru
      _
    %p23 = scmp.eq.s32.totalorder 0, 0
    // Predicated region
    $region10: #{tpu_custom_call.1} parent=1 // pred_check
      %p24 = pneg %p23
    $region11: #{tpu_custom_call.1} parent=1 // pred_check_branch
      %26 = sbr.rel (%p24) target = $region13
    $region12: #{tpu_custom_call.1} parent=1 // pred_region
      %27 = vst [vmem:[#allocation2] sm:$0xf] 0.0
      %28 = vst [vmem:[#allocation2 + $0x4] sm:$0xf] 0.0
    $region13: #{tpu_custom_call.1} parent=1 // pred_fallthru
      _
    %v29 = vld [vmem:[#allocation3] sm:$0xf]
    %v30 = vld [vmem:[#allocation3 + $0x8] sm:$0xf]
    %v31 = vld [vmem:[#allocation3 + $0x4] sm:$0xf]
    %v32 = vld [vmem:[#allocation3 + $0xc] sm:$0xf]
    %v33 = vadd.f32 %v29, %v31
    %v34 = vadd.f32 %v30, %v32
    %v35 = vld [vmem:[#allocation2] sm:$0xf]
    %v36 = vld [vmem:[#allocation2 + $0x4] sm:$0xf]
    %v37 = vadd.f32 %v35, %v33
    %v38 = vadd.f32 %v36, %v34
    %39 = vst [vmem:[#allocation2] sm:$0xf] %v37
    %40 = vst [vmem:[#allocation2 + $0x4] sm:$0xf] %v38
    // Predicated region
    $region14: #{tpu_custom_call.1} parent=1 // pred_check
      %p41 = pneg %p23
    $region15: #{tpu_custom_call.1} parent=1 // pred_check_branch
      %43 = sbr.rel (%p41) target = $region17
    $region16: #{tpu_custom_call.1} parent=1 // pred_region
      %v44 = vld [vmem:[#allocation2] sm:$0xf]
      %v45 = vld [vmem:[#allocation2 + $0x4] sm:$0xf]
      %vm46 = vcmask 1043456
      %v47 = vsel %vm46, %v44, 0.0
      %48 = vadd.xlane.f32.xlu0 %v47
      %v49 = vpop.xlane.xlu0 %48
      %v50 = vsel %vm46, %v45, 0.0
      %51 = vadd.xlane.f32.xlu0 %v50
      %v52 = vpop.xlane.xlu0 %51
      %v53 = vmul.f32 %v49, 0.00390625
      %v54 = vmul.f32 %v52, 0.00390625
      %v57 = vlaneseq
      %v58 = vand.u32 %v57, 127
      %v59 = vlaneseq
      %v60 = vshrl.u32 %v59, 7
      %v61 = vsub.s32 %v58, %v60
      %v62 = vrot.slane %v53, %v61
      %v63 = vlaneseq
      %v64 = vshrl.u32 %v63, 7
      %v65 = vsub.s32 %v58, %v64
      %v66 = vrot.slane %v54, %v65
      %vm67 = vcmask 1041409
      %v68 = vsel %vm67, %v66, %v62
      %vm70 = vcmask 25600
      %71 = vst.msk [vmem:[#allocation6] sm:$0x3] %vm70, %v68
    $region17: #{tpu_custom_call.1} parent=1 // pred_fallthru
      _
    // Predicated region
    $region18: #{tpu_custom_call.1} parent=1 // pred_check
      _
    $region19: #{tpu_custom_call.1} parent=1 // pred_check_branch
      %73 = sbr.rel (0) target = $region21
    $region20: #{tpu_custom_call.1} parent=1 // pred_region
      %s75 = ssub.s32 32, 32
      %76 = vsyncadd [#allocation5], %s75
      %s78 = sshll.u32 [#allocation6], 4
      %s79 = int_to_ptr.vmem [resolvable:$true] %s78
      %81 = dma.vmem_to_hbm [thread:$0]  %s79, 32, %s1, [#allocation5]
    $region21: #{tpu_custom_call.1} parent=1 // pred_fallthru
      _
    // Predicated region
    $region22: #{tpu_custom_call.1} parent=1 // pred_check
      _
    $region23: #{tpu_custom_call.1} parent=1 // pred_check_branch
      %83 = sbr.rel (0) target = $region25
    $region24: #{tpu_custom_call.1} parent=1 // pred_region
      %84 = dma.done [#allocation5], 32
    $region25: #{tpu_custom_call.1} parent=1 // pred_fallthru
      _
    %85 = vsyncpa [#allocation4], 1
    %86 = vsyncpa [#allocation5], 1

</llo_original>
